<compile_context>
chip_gen: v5e
topology: v5e:2x2
jax: 0.10.0
libtpu: 0.0.40
codegen_flags: <defaults>
</compile_context>

<pallas_src>
import functools

import jax
import jax.numpy as jnp
from jax.experimental import pallas as pl
from jax.experimental.pallas import tpu as pltpu

IN_CHANNELS = 128
PROJ_DIM = 64
BN_EPS = 1e-5
MAX_PIXEL_TILE = 8192                 # lane-axis tile (multiple of 128)
VMEM_LIMIT_BYTES = 28 * 1024 * 1024   # headroom for v5e (16 MiB default scoped VMEM)


def _round_up(x, m):
    return ((x + m - 1) // m) * m


def _choose_tile(n, hw):
    """Pick the lane-axis pixel tile (multiple of 128 unless it covers all of hw)."""
    tile = hw if hw <= MAX_PIXEL_TILE else MAX_PIXEL_TILE
    # v7x shards "parallel" grid axes over its 2 TensorCores: keep n*num_tiles >= 2.
    if n == 1 and hw > 2 * 128 and pl.cdiv(hw, tile) < 2:
        tile = max(128, _round_up(pl.cdiv(hw, 2), 128))
    return tile


def _stats_kernel(x_ref, w1_ref, b1_ref, stats_ref, h_ref, *, hw, tile, needs_mask):
    # x_ref: (C, T) f32 | w1_ref: (P, C) bf16 | b1_ref: (P, 1) f32
    # stats_ref: (P, 2) f32 -> col 0: sum(h), col 1: sum(h*h) for this tile
    # h_ref:     (P, T) bf16 -> conv1 activation staged to HBM for pass 2
    x = x_ref[...].astype(jnp.bfloat16)
    h = jnp.dot(w1_ref[...], x, preferred_element_type=jnp.float32) + b1_ref[...]
    h_ref[...] = h.astype(jnp.bfloat16)
    if needs_mask:
        t = pl.program_id(1)
        col = jax.lax.broadcasted_iota(jnp.int32, h.shape, dimension=1)
        h = jnp.where(t * tile + col < hw, h, 0.0)
    stats_ref[:, 0:1] = jnp.sum(h, axis=1, keepdims=True)
    stats_ref[:, 1:2] = jnp.sum(h * h, axis=1, keepdims=True)


def _apply_kernel(h_ref, scale_ref, shift_ref, w2_ref, b2_ref, o_ref):
    # h_ref: (P, T) bf16 staged conv1 output; BN + ReLU in f32, then conv2 on the MXU.
    h = h_ref[...].astype(jnp.float32)
    y = jnp.maximum(h * scale_ref[...] + shift_ref[...], 0.0)
    o_ref[...] = (jnp.dot(w2_ref[...], y.astype(jnp.bfloat16),
                          preferred_element_type=jnp.float32) + b2_ref[...])


def _const_spec(shape):
    return pl.BlockSpec(shape, lambda *_: (0,) * len(shape))


@jax.jit
def projection_head(x_nchw, params):
    """x_nchw: (N, C, H, W) float32 -> (N, C, H, W) float32."""
    w1, b1, gamma, beta, w2, b2 = params
    n, c, h, w = x_nchw.shape
    p = w1.shape[0]
    hw = h * w
    x3 = x_nchw.reshape(n, c, hw)                       # free: native NCHW layout

    tile = _choose_tile(n, hw)
    num_tiles = pl.cdiv(hw, tile)
    needs_mask = (tile * num_tiles) != hw

    w1_bf = w1.astype(jnp.bfloat16)
    w2_bf = w2.astype(jnp.bfloat16)
    b1c = b1.reshape(p, 1)
    b2c = b2.reshape(c, 1)

    x_spec = pl.BlockSpec((None, c, tile), lambda i, t: (i, 0, t))
    h_spec = pl.BlockSpec((None, p, tile), lambda i, t: (i, 0, t))
    cparams = pltpu.CompilerParams(
        dimension_semantics=("parallel", "parallel"),
        vmem_limit_bytes=VMEM_LIMIT_BYTES)

    # ---- pass 1: per-tile sum / sum-of-squares of h = w1 @ x + b1, stage bf16 h ----
    stats_parts, h_staged = pl.pallas_call(
        functools.partial(_stats_kernel, hw=hw, tile=tile, needs_mask=needs_mask),
        out_shape=(jax.ShapeDtypeStruct((n, num_tiles, p, 2), jnp.float32),
                   jax.ShapeDtypeStruct((n, p, hw), jnp.bfloat16)),
        grid=(n, num_tiles),
        in_specs=[x_spec, _const_spec((p, c)), _const_spec((p, 1))],
        out_specs=(pl.BlockSpec((None, None, p, 2), lambda i, t: (i, t, 0, 0)),
                   h_spec),
        compiler_params=cparams,
        cost_estimate=pl.CostEstimate(
            flops=2 * n * hw * c * p, transcendentals=0,
            bytes_accessed=n * c * hw * 4 + n * p * hw * 2),
    )(x3, w1_bf, b1c)

    # ---- fold BN (batch statistics) into per-channel scale/shift (tiny f32 math) ----
    sums = jnp.sum(stats_parts, axis=(0, 1))            # (P, 2)
    count = jnp.float32(n * hw)
    mu = sums[:, 0] / count
    var = jnp.maximum(sums[:, 1] / count - mu * mu, 0.0)   # biased variance (training mode)
    scale = gamma * jax.lax.rsqrt(var + BN_EPS)
    shift = beta - mu * scale
    scale = scale.reshape(p, 1).astype(jnp.float32)
    shift = shift.reshape(p, 1).astype(jnp.float32)
    # TODO(synk): running_mean/running_var buffer updates (training-time side effect)
    # are not materialized; the forward output does not depend on them.

    # ---- pass 2: read staged h -> BN(scale,shift) -> ReLU -> conv2, tiled & pipelined ----
    out3 = pl.pallas_call(
        _apply_kernel,
        out_shape=jax.ShapeDtypeStruct((n, c, hw), jnp.float32),
        grid=(n, num_tiles),
        in_specs=[h_spec, _const_spec((p, 1)), _const_spec((p, 1)),
                  _const_spec((c, p)), _const_spec((c, 1))],
        out_specs=x_spec,
        compiler_params=cparams,
        cost_estimate=pl.CostEstimate(
            flops=2 * n * hw * c * p, transcendentals=0,
            bytes_accessed=n * p * hw * 2 + n * c * hw * 4),
    )(h_staged, scale, shift, w2_bf, b2c)

    return out3.reshape(n, c, h, w)


def init_params(key):
    k1, k2, k3, k4, k5, k6 = jax.random.split(key, 6)
    # Conv2d(in=128, out=64, 1x1): weight (out, in)
    w1 = 0.05 * jax.random.normal(k1, (PROJ_DIM, IN_CHANNELS), jnp.float32)
    b1 = 0.01 * jax.random.normal(k2, (PROJ_DIM,), jnp.float32)
    gamma = 1.0 + 0.1 * jax.random.normal(k3, (PROJ_DIM,), jnp.float32)
    beta = 0.1 * jax.random.normal(k4, (PROJ_DIM,), jnp.float32)
    # Conv2d(in=64, out=128, 1x1): weight (out, in)
    w2 = 0.05 * jax.random.normal(k5, (IN_CHANNELS, PROJ_DIM), jnp.float32)
    b2 = 0.01 * jax.random.normal(k6, (IN_CHANNELS,), jnp.float32)
    return (w1, b1, gamma, beta, w2, b2)


def reference(x_nchw, params):
    """Pure-JAX f32 reference mirroring PyTorch training-mode semantics."""
    w1, b1, gamma, beta, w2, b2 = params
    n, c, h, w = x_nchw.shape
    x3 = x_nchw.reshape(n, c, h * w)
    hdn = jnp.einsum('pc,nck->npk', w1, x3) + b1[None, :, None]
    mu = jnp.mean(hdn, axis=(0, 2), keepdims=True)
    var = jnp.mean((hdn - mu) ** 2, axis=(0, 2), keepdims=True)
    hdn = (hdn - mu) * jax.lax.rsqrt(var + BN_EPS) * gamma[None, :, None] + beta[None, :, None]
    hdn = jnp.maximum(hdn, 0.0)
    out = jnp.einsum('cp,npk->nck', w2, hdn) + b2[None, :, None]
    return out.reshape(n, c, h, w)


if __name__ == "__main__":
    key = jax.random.PRNGKey(0)
    kx, kp = jax.random.split(key)
    # Small input consistent with module defaults (in_channels=128).
    x = jax.random.normal(kx, (2, IN_CHANNELS, 16, 16), jnp.float32)
    params = init_params(kp)

    out = projection_head(x, params)
    out = jax.block_until_ready(out)
    assert out.shape == x.shape

    ref = reference(x, params)
    # bf16 MXU operands + bf16-staged h (f32 accumulate) -> small deviation vs f32 ref.
    assert jnp.allclose(out, ref, atol=3e-2, rtol=3e-2), (
        f"max abs err {jnp.max(jnp.abs(out - ref))}")
    print("KERNEL_OK")
</pallas_src>

<mosaic_0001>
module attributes {stable_mosaic.version = 11 : i64} {
  func.func @_stats_kernel(%arg0: i32, %arg1: i32, %arg2: memref<1x128x256xf32, #tpu.memory_space<vmem>>, %arg3: memref<64x128xbf16, #tpu.memory_space<vmem>>, %arg4: memref<64x1xf32, #tpu.memory_space<vmem>>, %arg5: memref<1x1x64x2xf32, #tpu.memory_space<vmem>>, %arg6: memref<1x64x256xbf16, #tpu.memory_space<vmem>>) attributes {dimension_semantics = [#tpu.dimension_semantics<parallel>, #tpu.dimension_semantics<parallel>], iteration_bounds = array<i64: 2, 1>, scalar_prefetch = 0 : i64, scratch_operands = 0 : i64, tpu.core_type = #tpu.core_type<tc>, window_params = [{transform_indices = @transform_0, window_bounds = array<i64: 1, 128, 256>}, {pipeline_mode = #tpu.pipeline_mode<synchronous>, transform_indices = @transform_1, window_bounds = array<i64: 64, 128>}, {pipeline_mode = #tpu.pipeline_mode<synchronous>, transform_indices = @transform_2, window_bounds = array<i64: 64, 1>}, {transform_indices = @transform_3, window_bounds = array<i64: 1, 1, 64, 2>}, {transform_indices = @transform_4, window_bounds = array<i64: 1, 64, 256>}]} {
    %c0 = arith.constant 0 : index
    %c0_0 = arith.constant 0 : index
    %c0_1 = arith.constant 0 : index
    %0 = vector.load %arg2[%c0, %c0_0, %c0_1] : memref<1x128x256xf32, #tpu.memory_space<vmem>>, vector<1x128x256xf32>
    %1 = vector.shape_cast %0 : vector<1x128x256xf32> to vector<128x256xf32>
    %2 = arith.truncf %1 : vector<128x256xf32> to vector<128x256xbf16>
    %c0_2 = arith.constant 0 : index
    %c0_3 = arith.constant 0 : index
    %3 = vector.load %arg3[%c0_2, %c0_3] : memref<64x128xbf16, #tpu.memory_space<vmem>>, vector<64x128xbf16>
    %cst = arith.constant dense<0.000000e+00> : vector<64x256xf32>
    %4 = tpu.matmul %3, %2, %cst {dimension_numbers = #tpu.dot_dimension_numbers<[1], [0], [0], [1], [0, 0, 1, 1], [], []>} : vector<64x128xbf16>, vector<128x256xbf16>, vector<64x256xf32> -> vector<64x256xf32>
    %c0_4 = arith.constant 0 : index
    %c0_5 = arith.constant 0 : index
    %5 = vector.load %arg4[%c0_4, %c0_5] : memref<64x1xf32, #tpu.memory_space<vmem>>, vector<64x1xf32>
    %6 = vector.broadcast %5 : vector<64x1xf32> to vector<64x256xf32>
    %7 = arith.addf %4, %6 : vector<64x256xf32>
    %8 = arith.truncf %7 : vector<64x256xf32> to vector<64x256xbf16>
    %c0_6 = arith.constant 0 : index
    %c0_7 = arith.constant 0 : index
    %c0_8 = arith.constant 0 : index
    %9 = vector.load %arg6[%c0_6, %c0_7, %c0_8] : memref<1x64x256xbf16, #tpu.memory_space<vmem>>, vector<1x64x256xbf16>
    %10 = vector.shape_cast %9 : vector<1x64x256xbf16> to vector<64x256xbf16>
    %11 = vector.shape_cast %8 : vector<64x256xbf16> to vector<1x64x256xbf16>
    tpu.vector_store %arg6[%c0_6, %c0_7, %c0_8], %11 {strides = array<i32>} : memref<1x64x256xbf16, #tpu.memory_space<vmem>>, vector<1x64x256xbf16>,
    %cst_9 = arith.constant dense<0.000000e+00> : vector<64xf32>
    %12 = vector.multi_reduction <add>, %7, %cst_9 [1] : vector<64x256xf32> to vector<64xf32>
    %13 = vector.shape_cast %12 : vector<64xf32> to vector<64x1xf32>
    %c0_10 = arith.constant 0 : index
    %c0_11 = arith.constant 0 : index
    %c0_12 = arith.constant 0 : index
    %c0_13 = arith.constant 0 : index
    %14 = vector.load %arg5[%c0_10, %c0_11, %c0_12, %c0_13] : memref<1x1x64x2xf32, #tpu.memory_space<vmem>>, vector<1x1x64x1xf32>
    %15 = vector.shape_cast %14 : vector<1x1x64x1xf32> to vector<64x1xf32>
    %16 = vector.shape_cast %13 : vector<64x1xf32> to vector<1x1x64x1xf32>
    tpu.vector_store %arg5[%c0_10, %c0_11, %c0_12, %c0_13], %16 {strides = array<i32>} : memref<1x1x64x2xf32, #tpu.memory_space<vmem>>, vector<1x1x64x1xf32>,
    %17 = arith.mulf %7, %7 : vector<64x256xf32>
    %cst_14 = arith.constant dense<0.000000e+00> : vector<64xf32>
    %18 = vector.multi_reduction <add>, %17, %cst_14 [1] : vector<64x256xf32> to vector<64xf32>
    %19 = vector.shape_cast %18 : vector<64xf32> to vector<64x1xf32>
    %c0_15 = arith.constant 0 : index
    %c0_16 = arith.constant 0 : index
    %c0_17 = arith.constant 0 : index
    %c1 = arith.constant 1 : index
    %20 = vector.load %arg5[%c0_15, %c0_16, %c0_17, %c1] : memref<1x1x64x2xf32, #tpu.memory_space<vmem>>, vector<1x1x64x1xf32>
    %21 = vector.shape_cast %20 : vector<1x1x64x1xf32> to vector<64x1xf32>
    %22 = vector.shape_cast %19 : vector<64x1xf32> to vector<1x1x64x1xf32>
    tpu.vector_store %arg5[%c0_15, %c0_16, %c0_17, %c1], %22 {strides = array<i32>} : memref<1x1x64x2xf32, #tpu.memory_space<vmem>>, vector<1x1x64x1xf32>,
    return
  }
  func.func @transform_0(%arg0: i32, %arg1: i32) -> (i32, i32, i32) {
    %c0_i32 = arith.constant 0 : i32
    %c0_i32_0 = arith.constant 0 : i32
    return %arg0, %c0_i32, %arg1 : i32, i32, i32
  }
  func.func @transform_1(%arg0: i32, %arg1: i32) -> (i32, i32) {
    %c0_i32 = arith.constant 0 : i32
    %c0_i32_0 = arith.constant 0 : i32
    %c0_i32_1 = arith.constant 0 : i32
    return %c0_i32, %c0_i32_0 : i32, i32
  }
  func.func @transform_2(%arg0: i32, %arg1: i32) -> (i32, i32) {
    %c0_i32 = arith.constant 0 : i32
    %c0_i32_0 = arith.constant 0 : i32
    %c0_i32_1 = arith.constant 0 : i32
    return %c0_i32, %c0_i32_0 : i32, i32
  }
  func.func @transform_3(%arg0: i32, %arg1: i32) -> (i32, i32, i32, i32) {
    %c0_i32 = arith.constant 0 : i32
    %c0_i32_0 = arith.constant 0 : i32
    %c0_i32_1 = arith.constant 0 : i32
    return %arg0, %arg1, %c0_i32, %c0_i32_0 : i32, i32, i32, i32
  }
  func.func @transform_4(%arg0: i32, %arg1: i32) -> (i32, i32, i32) {
    %c0_i32 = arith.constant 0 : i32
    %c0_i32_0 = arith.constant 0 : i32
    return %arg0, %c0_i32, %arg1 : i32, i32, i32
  }
}

module attributes {stable_mosaic.version = 11 : i64} {
  func.func @_apply_kernel(%arg0: i32, %arg1: i32, %arg2: memref<1x64x256xbf16, #tpu.memory_space<vmem>>, %arg3: memref<64x1xf32, #tpu.memory_space<vmem>>, %arg4: memref<64x1xf32, #tpu.memory_space<vmem>>, %arg5: memref<128x64xbf16, #tpu.memory_space<vmem>>, %arg6: memref<128x1xf32, #tpu.memory_space<vmem>>, %arg7: memref<1x128x256xf32, #tpu.memory_space<vmem>>) attributes {dimension_semantics = [#tpu.dimension_semantics<parallel>, #tpu.dimension_semantics<parallel>], iteration_bounds = array<i64: 2, 1>, scalar_prefetch = 0 : i64, scratch_operands = 0 : i64, tpu.core_type = #tpu.core_type<tc>, window_params = [{transform_indices = @transform_0, window_bounds = array<i64: 1, 64, 256>}, {pipeline_mode = #tpu.pipeline_mode<synchronous>, transform_indices = @transform_1, window_bounds = array<i64: 64, 1>}, {pipeline_mode = #tpu.pipeline_mode<synchronous>, transform_indices = @transform_2, window_bounds = array<i64: 64, 1>}, {pipeline_mode = #tpu.pipeline_mode<synchronous>, transform_indices = @transform_3, window_bounds = array<i64: 128, 64>}, {pipeline_mode = #tpu.pipeline_mode<synchronous>, transform_indices = @transform_4, window_bounds = array<i64: 128, 1>}, {transform_indices = @transform_5, window_bounds = array<i64: 1, 128, 256>}]} {
    %c0 = arith.constant 0 : index
    %c0_0 = arith.constant 0 : index
    %c0_1 = arith.constant 0 : index
    %0 = vector.load %arg2[%c0, %c0_0, %c0_1] : memref<1x64x256xbf16, #tpu.memory_space<vmem>>, vector<1x64x256xbf16>
    %1 = vector.shape_cast %0 : vector<1x64x256xbf16> to vector<64x256xbf16>
    %2 = arith.extf %1 : vector<64x256xbf16> to vector<64x256xf32>
    %c0_2 = arith.constant 0 : index
    %c0_3 = arith.constant 0 : index
    %3 = vector.load %arg3[%c0_2, %c0_3] : memref<64x1xf32, #tpu.memory_space<vmem>>, vector<64x1xf32>
    %4 = vector.broadcast %3 : vector<64x1xf32> to vector<64x256xf32>
    %5 = arith.mulf %2, %4 : vector<64x256xf32>
    %c0_4 = arith.constant 0 : index
    %c0_5 = arith.constant 0 : index
    %6 = vector.load %arg4[%c0_4, %c0_5] : memref<64x1xf32, #tpu.memory_space<vmem>>, vector<64x1xf32>
    %7 = vector.broadcast %6 : vector<64x1xf32> to vector<64x256xf32>
    %8 = arith.addf %5, %7 : vector<64x256xf32>
    %cst = arith.constant 0.000000e+00 : f32
    %9 = vector.broadcast %cst : f32 to vector<64x256xf32>
    %10 = arith.maximumf %8, %9 : vector<64x256xf32>
    %c0_6 = arith.constant 0 : index
    %c0_7 = arith.constant 0 : index
    %11 = vector.load %arg5[%c0_6, %c0_7] : memref<128x64xbf16, #tpu.memory_space<vmem>>, vector<128x64xbf16>
    %12 = arith.truncf %10 : vector<64x256xf32> to vector<64x256xbf16>
    %cst_8 = arith.constant dense<0.000000e+00> : vector<128x256xf32>
    %13 = tpu.matmul %11, %12, %cst_8 {dimension_numbers = #tpu.dot_dimension_numbers<[1], [0], [0], [1], [0, 0, 1, 1], [], []>} : vector<128x64xbf16>, vector<64x256xbf16>, vector<128x256xf32> -> vector<128x256xf32>
    %c0_9 = arith.constant 0 : index
    %c0_10 = arith.constant 0 : index
    %14 = vector.load %arg6[%c0_9, %c0_10] : memref<128x1xf32, #tpu.memory_space<vmem>>, vector<128x1xf32>
    %15 = vector.broadcast %14 : vector<128x1xf32> to vector<128x256xf32>
    %16 = arith.addf %13, %15 : vector<128x256xf32>
    %c0_11 = arith.constant 0 : index
    %c0_12 = arith.constant 0 : index
    %c0_13 = arith.constant 0 : index
    %17 = vector.load %arg7[%c0_11, %c0_12, %c0_13] : memref<1x128x256xf32, #tpu.memory_space<vmem>>, vector<1x128x256xf32>
    %18 = vector.shape_cast %17 : vector<1x128x256xf32> to vector<128x256xf32>
    %19 = vector.shape_cast %16 : vector<128x256xf32> to vector<1x128x256xf32>
    tpu.vector_store %arg7[%c0_11, %c0_12, %c0_13], %19 {strides = array<i32>} : memref<1x128x256xf32, #tpu.memory_space<vmem>>, vector<1x128x256xf32>,
    return
  }
  func.func @transform_0(%arg0: i32, %arg1: i32) -> (i32, i32, i32) {
    %c0_i32 = arith.constant 0 : i32
    %c0_i32_0 = arith.constant 0 : i32
    return %arg0, %c0_i32, %arg1 : i32, i32, i32
  }
  func.func @transform_1(%arg0: i32, %arg1: i32) -> (i32, i32) {
    %c0_i32 = arith.constant 0 : i32
    %c0_i32_0 = arith.constant 0 : i32
    %c0_i32_1 = arith.constant 0 : i32
    return %c0_i32, %c0_i32_0 : i32, i32
  }
  func.func @transform_2(%arg0: i32, %arg1: i32) -> (i32, i32) {
    %c0_i32 = arith.constant 0 : i32
    %c0_i32_0 = arith.constant 0 : i32
    %c0_i32_1 = arith.constant 0 : i32
    return %c0_i32, %c0_i32_0 : i32, i32
  }
  func.func @transform_3(%arg0: i32, %arg1: i32) -> (i32, i32) {
    %c0_i32 = arith.constant 0 : i32
    %c0_i32_0 = arith.constant 0 : i32
    %c0_i32_1 = arith.constant 0 : i32
    return %c0_i32, %c0_i32_0 : i32, i32
  }
  func.func @transform_4(%arg0: i32, %arg1: i32) -> (i32, i32) {
    %c0_i32 = arith.constant 0 : i32
    %c0_i32_0 = arith.constant 0 : i32
    %c0_i32_1 = arith.constant 0 : i32
    return %c0_i32, %c0_i32_0 : i32, i32
  }
  func.func @transform_5(%arg0: i32, %arg1: i32) -> (i32, i32, i32) {
    %c0_i32 = arith.constant 0 : i32
    %c0_i32_0 = arith.constant 0 : i32
    return %arg0, %c0_i32, %arg1 : i32, i32, i32
  }
}

</mosaic_0001>

<llo_original>
// kernel: projection_head.3
$region0: #{projection_head.3}
  #allocation0 [shape = 'u32[]', space=smem, size = 0x4, offset = 0x4, fixed_abs, tag = 'smem constant byte address 0x4 - core index']
  #allocation1 [shape = 'u32[72,128]{1,0:T(1,128)}', space=vmem, size = 0x9000, scoped, tag = 'internal scratch']
  %s0 = inlined_call_operand.vmem [shape: bf16[2,64,256], index: 0, kind: input, shape index: {}]
  %s1 = inlined_call_operand.vmem [shape: f32[64,1], index: 1, kind: input, shape index: {}]
  %s2 = inlined_call_operand.vmem [shape: f32[64,1], index: 2, kind: input, shape index: {}]
  %s3 = inlined_call_operand.vmem [shape: bf16[128,64], index: 3, kind: input, shape index: {}]
  %s4 = inlined_call_operand.vmem [shape: f32[128,1], index: 4, kind: input, shape index: {}]
  %s5 = inlined_call_operand.vmem [shape: f32[2,128,256], index: 5, kind: output, shape index: {}]
  %s6 = sld [smem:[#allocation0]]
  $region53: #{projection_head.3} parent=0
    _
  %s8 = ssub.s32 1, %s6
  %s9 = scalar_select 0, %s8, %s6
  loop: start=0, step=1, limit=4
  $region2: #{projection_head.3} parent=0 // loop_pre_header
    _
  $region3: #{projection_head.3} parent=0 // loop_header
    %s11 = sphi 0, %s15
    %p12 = scmp.ge.s32.totalorder %s11, 4
    %s18 = sphi 0, %s30
    %s19 = sphi 0, %s26
    %s20 = sphi 0, %s18
    %s21 = sphi 0, %s19
    %s22 = sphi 0, %s20
    %s23 = sphi 0, %s21
    %s35 = sphi 0, %s37
    %s38 = sphi 0, %s35
    %s39 = sphi 0, %s38
    %s55 = sphi 0, %s39
    %s59 = sphi 0, %s59
    %s61 = sphi 0, %s59
    %s62 = sphi 0, %s61
    %s76 = sphi 0, %s62
    %s80 = sphi 0, %s80
    %s82 = sphi 0, %s80
    %s83 = sphi 0, %s82
    %s97 = sphi 0, %s83
    %s101 = sphi 0, %s101
    %s103 = sphi 0, %s101
    %s104 = sphi 0, %s103
    %s118 = sphi 0, %s104
    %s122 = sphi 0, %s122
    %s124 = sphi 0, %s122
    %s125 = sphi 0, %s124
    %s139 = sphi 0, %s125
    %s147 = sphi 0, %s149
    %s150 = sphi 0, %s147
    %s151 = sphi 0, %s150
    %s167 = sphi 0, %s151
  $region4: #{projection_head.3} parent=0 // loop_header_branch
    %14 = sbr.rel (%p12) target = $region8
  $region5: #{projection_head.3} parent=0 // loop_body
    %s16 = ssub.s32 %s11, 1
    %s17 = ssub.s32 %s11, 2
    %s24 = sadd.s32 1, %s19
    %p25 = scmp.ge.s32.totalorder %s24, 1
    %s26 = scalar_select %p25, 0, %s24
    %s27 = sadd.s32 1, %s18
    %s28 = scalar_select %p25, %s27, %s18
    %p29 = scmp.ge.s32.totalorder %s28, 2
    %s30 = scalar_select %p29, 0, %s28
    %s31 = ssub.s32 %s18, %s30
    %s32 = ssub.s32 %s19, %s26
    %s33 = sor.u32 %s31, %s32
    %p34 = scmp.eq.s32.totalorder %s33, 0
    %s36 = sadd.s32 %s35, 1
    %s37 = scalar_select %p34, %s35, %s36
    %p40 = pneg %p34
    %p41 = scmp.eq.s32.totalorder %s11, 1
    %p42 = por %p40, %p41
    %p43 = scmp.ne.s32.totalorder %s35, %s38
    %p44 = scmp.eq.s32.totalorder %s11, 0
    %p45 = por %p43, %p44
    %p46 = scmp.ne.s32.totalorder %s35, %s38
    %p47 = scmp.eq.s32.totalorder %s16, 1
    %p48 = por %p46, %p47
    %p49 = scmp.ne.s32.totalorder %s38, %s39
    %p50 = scmp.eq.s32.totalorder %s16, 0
    %p51 = por %p49, %p50
    %p52 = scmp.ne.s32.totalorder %s38, %s39
    %p53 = scmp.eq.s32.totalorder %s17, 1
    %p54 = por %p52, %p53
    %p56 = scmp.ne.s32.totalorder %s39, %s55
    %p57 = scmp.eq.s32.totalorder %s17, 0
    %p58 = por %p56, %p57
    %s60 = sadd.s32 %s59, 1
    %p63 = scmp.eq.s32.totalorder %s11, 1
    %p64 = scmp.ne.s32.totalorder %s59, %s61
    %p65 = scmp.eq.s32.totalorder %s11, 0
    %p66 = por %p64, %p65
    %p67 = scmp.ne.s32.totalorder %s59, %s61
    %p68 = scmp.eq.s32.totalorder %s16, 1
    %p69 = por %p67, %p68
    %p70 = scmp.ne.s32.totalorder %s61, %s62
    %p71 = scmp.eq.s32.totalorder %s16, 0
    %p72 = por %p70, %p71
    %p73 = scmp.ne.s32.totalorder %s61, %s62
    %p74 = scmp.eq.s32.totalorder %s17, 1
    %p75 = por %p73, %p74
    %p77 = scmp.ne.s32.totalorder %s62, %s76
    %p78 = scmp.eq.s32.totalorder %s17, 0
    %p79 = por %p77, %p78
    %s81 = sadd.s32 %s80, 1
    %p84 = scmp.eq.s32.totalorder %s11, 1
    %p85 = scmp.ne.s32.totalorder %s80, %s82
    %p86 = scmp.eq.s32.totalorder %s11, 0
    %p87 = por %p85, %p86
    %p88 = scmp.ne.s32.totalorder %s80, %s82
    %p89 = scmp.eq.s32.totalorder %s16, 1
    %p90 = por %p88, %p89
    %p91 = scmp.ne.s32.totalorder %s82, %s83
    %p92 = scmp.eq.s32.totalorder %s16, 0
    %p93 = por %p91, %p92
    %p94 = scmp.ne.s32.totalorder %s82, %s83
    %p95 = scmp.eq.s32.totalorder %s17, 1
    %p96 = por %p94, %p95
    %p98 = scmp.ne.s32.totalorder %s83, %s97
    %p99 = scmp.eq.s32.totalorder %s17, 0
    %p100 = por %p98, %p99
    %s102 = sadd.s32 %s101, 1
    %p105 = scmp.eq.s32.totalorder %s11, 1
    %p106 = scmp.ne.s32.totalorder %s101, %s103
    %p107 = scmp.eq.s32.totalorder %s11, 0
    %p108 = por %p106, %p107
    %p109 = scmp.ne.s32.totalorder %s101, %s103
    %p110 = scmp.eq.s32.totalorder %s16, 1
    %p111 = por %p109, %p110
    %p112 = scmp.ne.s32.totalorder %s103, %s104
    %p113 = scmp.eq.s32.totalorder %s16, 0
    %p114 = por %p112, %p113
    %p115 = scmp.ne.s32.totalorder %s103, %s104
    %p116 = scmp.eq.s32.totalorder %s17, 1
    %p117 = por %p115, %p116
    %p119 = scmp.ne.s32.totalorder %s104, %s118
    %p120 = scmp.eq.s32.totalorder %s17, 0
    %p121 = por %p119, %p120
    %s123 = sadd.s32 %s122, 1
    %p126 = scmp.eq.s32.totalorder %s11, 1
    %p127 = scmp.ne.s32.totalorder %s122, %s124
    %p128 = scmp.eq.s32.totalorder %s11, 0
    %p129 = por %p127, %p128
    %p130 = scmp.ne.s32.totalorder %s122, %s124
    %p131 = scmp.eq.s32.totalorder %s16, 1
    %p132 = por %p130, %p131
    %p133 = scmp.ne.s32.totalorder %s124, %s125
    %p134 = scmp.eq.s32.totalorder %s16, 0
    %p135 = por %p133, %p134
    %p136 = scmp.ne.s32.totalorder %s124, %s125
    %p137 = scmp.eq.s32.totalorder %s17, 1
    %p138 = por %p136, %p137
    %p140 = scmp.ne.s32.totalorder %s125, %s139
    %p141 = scmp.eq.s32.totalorder %s17, 0
    %p142 = por %p140, %p141
    %s143 = ssub.s32 %s18, %s30
    %s144 = ssub.s32 %s19, %s26
    %s145 = sor.u32 %s143, %s144
    %p146 = scmp.eq.s32.totalorder %s145, 0
    %s148 = sadd.s32 %s147, 1
    %s149 = scalar_select %p146, %s147, %s148
    %p152 = pneg %p146
    %p153 = scmp.eq.s32.totalorder %s11, 1
    %p154 = por %p152, %p153
    %p155 = scmp.ne.s32.totalorder %s147, %s150
    %p156 = scmp.eq.s32.totalorder %s11, 0
    %p157 = por %p155, %p156
    %p158 = scmp.ne.s32.totalorder %s147, %s150
    %p159 = scmp.eq.s32.totalorder %s16, 1
    %p160 = por %p158, %p159
    %p161 = scmp.ne.s32.totalorder %s150, %s151
    %p162 = scmp.eq.s32.totalorder %s16, 0
    %p163 = por %p161, %p162
    %p164 = scmp.ne.s32.totalorder %s150, %s151
    %p165 = scmp.eq.s32.totalorder %s17, 1
    %p166 = por %p164, %p165
    %p168 = scmp.ne.s32.totalorder %s151, %s167
    %p169 = scmp.eq.s32.totalorder %s17, 0
    %p170 = por %p168, %p169
    %p171 = scmp.le.s32.totalorder 1, %s11
    %p172 = scmp.lt.s32.totalorder %s11, 3
    %p173 = pnand %p171, %p172
    %p174 = pneg %p173
    // Predicated region
    $region9: #{projection_head.3} parent=5 // pred_check
      _
    $region10: #{projection_head.3} parent=5 // pred_check_branch
      %176 = sbr.rel (%p173) target = $region12
    $region11: #{projection_head.3} parent=5 // pred_region
      %s177 = ssub.s32 %s11, 1
      // Predicated region
      $region13: #{projection_head.3} parent=11 // pred_check
        %p178 = pneg %p72
      $region14: #{projection_head.3} parent=11 // pred_check_branch
        %180 = sbr.rel (%p178) target = $region16
      $region15: #{projection_head.3} parent=11 // pred_region
        _
      $region16: #{projection_head.3} parent=11 // pred_fallthru
        _
      // Predicated region
      $region17: #{projection_head.3} parent=11 // pred_check
        %p181 = pneg %p93
      $region18: #{projection_head.3} parent=11 // pred_check_branch
        %183 = sbr.rel (%p181) target = $region20
      $region19: #{projection_head.3} parent=11 // pred_region
        _
      $region20: #{projection_head.3} parent=11 // pred_fallthru
        _
      // Predicated region
      $region21: #{projection_head.3} parent=11 // pred_check
        %p184 = pneg %p114
      $region22: #{projection_head.3} parent=11 // pred_check_branch
        %186 = sbr.rel (%p184) target = $region24
      $region23: #{projection_head.3} parent=11 // pred_region
        _
      $region24: #{projection_head.3} parent=11 // pred_fallthru
        _
      // Predicated region
      $region25: #{projection_head.3} parent=11 // pred_check
        %p187 = pneg %p135
      $region26: #{projection_head.3} parent=11 // pred_check_branch
        %189 = sbr.rel (%p187) target = $region28
      $region27: #{projection_head.3} parent=11 // pred_region
        _
      $region28: #{projection_head.3} parent=11 // pred_fallthru
        _
    $region12: #{projection_head.3} parent=5 // pred_fallthru
      _
    %p190 = scmp.lt.s32.totalorder %s11, 2
    // Predicated region
    $region29: #{projection_head.3} parent=5 // pred_check
      %p191 = pneg %p190
    $region30: #{projection_head.3} parent=5 // pred_check_branch
      %193 = sbr.rel (%p191) target = $region32
    $region31: #{projection_head.3} parent=5 // pred_region
      // Predicated region
      $region33: #{projection_head.3} parent=31 // pred_check
        %p194 = pneg %p45
      $region34: #{projection_head.3} parent=31 // pred_check_branch
        %196 = sbr.rel (%p194) target = $region36
      $region35: #{projection_head.3} parent=31 // pred_region
        %s197 = smul.u32 2, %s19
        %p198 = scmp.lt.s32.totalorder %s18, 1
        %s199 = scalar_select %p198, %s18, 1
        %p200 = scmp.lt.s32.totalorder %s197, 1
        %s201 = scalar_select %p200, %s197, 1
        %s202 = smul.addr %s199, 16
        %s203 = sadd.s32 %s201, %s202
        %s204 = smul.addr %s203, 4
        %s205 = scalar_lea.vmem %s0, %s204
        %s206 = smul.u32 2, %s19
      $region36: #{projection_head.3} parent=31 // pred_fallthru
        _
    $region32: #{projection_head.3} parent=5 // pred_fallthru
      _
    %p207 = scmp.le.s32.totalorder 1, %s11
    %p208 = scmp.lt.s32.totalorder %s11, 3
    %p209 = pnand %p207, %p208
    %p210 = pneg %p209
    // Predicated region
    $region37: #{projection_head.3} parent=5 // pred_check
      _
    $region38: #{projection_head.3} parent=5 // pred_check_branch
      %212 = sbr.rel (%p209) target = $region40
    $region39: #{projection_head.3} parent=5 // pred_region
      %s213 = ssub.s32 %s11, 1
      %s214 = smul.u32 2, %s21
      %p215 = scmp.lt.s32.totalorder %s20, 1
      %s216 = scalar_select %p215, %s20, 1
      %p217 = scmp.lt.s32.totalorder %s214, 1
      %s218 = scalar_select %p217, %s214, 1
      %s219 = smul.addr %s216, 16
      %s220 = sadd.s32 %s218, %s219
      %s221 = smul.addr %s220, 4
      %s222 = scalar_lea.vmem %s0, %s221
      %p223 = pneg %p51
      %p224 = pneg %p48
      %p225 = pneg %p72
      %p226 = pneg %p69
      %p227 = pneg %p93
      %p228 = pneg %p90
      %p229 = pneg %p114
      %p230 = pneg %p111
      %p231 = pneg %p135
      %p232 = pneg %p132
      %p233 = pneg %p163
      %p234 = pneg %p160
      %s235 = smul.u32 2, %s21
      %p236 = scmp.lt.s32.totalorder %s20, 1
      %s237 = scalar_select %p236, %s20, 1
      %p238 = scmp.lt.s32.totalorder %s235, 1
      %s239 = scalar_select %p238, %s235, 1
      %s240 = smul.addr %s237, 32
      %s241 = sadd.s32 %s239, %s240
      %s242 = smul.addr %s241, 8
      %s243 = scalar_lea.vmem %s5, %s242
      %s244 = smul.u32 2, %s21
      %p245 = scmp.lt.s32.totalorder %s20, 1
      %s246 = scalar_select %p245, %s20, 1
      %p247 = scmp.lt.s32.totalorder %s244, 1
      %s248 = scalar_select %p247, %s244, 1
      %s249 = smul.addr %s246, 16
      %s250 = sadd.s32 %s248, %s249
      %s251 = smul.addr %s250, 4
      %s252 = scalar_lea.vmem %s0, %s251
      %s253 = smul.u32 2, %s21
      %s254 = smul.u32 2, %s21
      %p255 = scmp.lt.s32.totalorder %s20, 1
      %s256 = scalar_select %p255, %s20, 1
      %p257 = scmp.lt.s32.totalorder %s254, 1
      %s258 = scalar_select %p257, %s254, 1
      %s259 = smul.addr %s256, 32
      %s260 = sadd.s32 %s258, %s259
      %s261 = smul.addr %s260, 8
      %s262 = scalar_lea.vmem %s5, %s261
      %s263 = smul.u32 2, %s21
      %v265 = vld [vmem:[%s252] sm:$0xff]
      %v266 = vld [vmem:[%s252 + $0x8] sm:$0xff]
      %v267 = vld [vmem:[%s252 + $0x10] sm:$0xff]
      %v268 = vld [vmem:[%s252 + $0x18] sm:$0xff]
      %v269 = vld [vmem:[%s252 + $0x20] sm:$0xff]
      %v270 = vld [vmem:[%s252 + $0x28] sm:$0xff]
      %v271 = vld [vmem:[%s252 + $0x30] sm:$0xff]
      %v272 = vld [vmem:[%s252 + $0x38] sm:$0xff]
      %v273 = vunpack.c.l.bf16 %v265
      %v274 = vunpack.c.h.bf16 %v265
      %v275 = vunpack.c.l.bf16 %v266
      %v276 = vunpack.c.h.bf16 %v266
      %v277 = vunpack.c.l.bf16 %v267
      %v278 = vunpack.c.h.bf16 %v267
      %v279 = vunpack.c.l.bf16 %v268
      %v280 = vunpack.c.h.bf16 %v268
      %v281 = vunpack.c.l.bf16 %v269
      %v282 = vunpack.c.h.bf16 %v269
      %v283 = vunpack.c.l.bf16 %v270
      %v284 = vunpack.c.h.bf16 %v270
      %v285 = vunpack.c.l.bf16 %v271
      %v286 = vunpack.c.h.bf16 %v271
      %v287 = vunpack.c.l.bf16 %v272
      %v288 = vunpack.c.h.bf16 %v272
      %v289 = vld [vmem:[%s1] sm:$0xff]
      %v290 = vld [vmem:[%s1 + $0x8] sm:$0xff]
      %v291 = vld [vmem:[%s1 + $0x10] sm:$0xff]
      %v292 = vld [vmem:[%s1 + $0x18] sm:$0xff]
      %v293 = vld [vmem:[%s1 + $0x20] sm:$0xff]
      %v294 = vld [vmem:[%s1 + $0x28] sm:$0xff]
      %v295 = vld [vmem:[%s1 + $0x30] sm:$0xff]
      %v296 = vld [vmem:[%s1 + $0x38] sm:$0xff]
      %298 = vset.pattern.permute.xlu0 0
      %299 = vperm.xlu0 %298, %v289
      %v300 = vpop.permute.xlu0 %299
      %303 = vset.pattern.permute.xlu0 0
      %304 = vperm.xlu0 %303, %v290
      %v305 = vpop.permute.xlu0 %304
      %308 = vset.pattern.permute.xlu0 0
      %309 = vperm.xlu0 %308, %v291
      %v310 = vpop.permute.xlu0 %309
      %313 = vset.pattern.permute.xlu0 0
      %314 = vperm.xlu0 %313, %v292
      %v315 = vpop.permute.xlu0 %314
      %318 = vset.pattern.permute.xlu0 0
      %319 = vperm.xlu0 %318, %v293
      %v320 = vpop.permute.xlu0 %319
      %323 = vset.pattern.permute.xlu0 0
      %324 = vperm.xlu0 %323, %v294
      %v325 = vpop.permute.xlu0 %324
      %328 = vset.pattern.permute.xlu0 0
      %329 = vperm.xlu0 %328, %v295
      %v330 = vpop.permute.xlu0 %329
      %333 = vset.pattern.permute.xlu0 0
      %334 = vperm.xlu0 %333, %v296
      %v335 = vpop.permute.xlu0 %334
      %v337 = vmul.f32 %v273, %v300
      %v338 = vmul.f32 %v274, %v300
      %v339 = vmul.f32 %v275, %v305
      %v340 = vmul.f32 %v276, %v305
      %v341 = vmul.f32 %v277, %v310
      %v342 = vmul.f32 %v278, %v310
      %v343 = vmul.f32 %v279, %v315
      %v344 = vmul.f32 %v280, %v315
      %v345 = vmul.f32 %v281, %v320
      %v346 = vmul.f32 %v282, %v320
      %v347 = vmul.f32 %v283, %v325
      %v348 = vmul.f32 %v284, %v325
      %v349 = vmul.f32 %v285, %v330
      %v350 = vmul.f32 %v286, %v330
      %v351 = vmul.f32 %v287, %v335
      %v352 = vmul.f32 %v288, %v335
      %v353 = vld [vmem:[%s2] sm:$0xff]
      %v354 = vld [vmem:[%s2 + $0x8] sm:$0xff]
      %v355 = vld [vmem:[%s2 + $0x10] sm:$0xff]
      %v356 = vld [vmem:[%s2 + $0x18] sm:$0xff]
      %v357 = vld [vmem:[%s2 + $0x20] sm:$0xff]
      %v358 = vld [vmem:[%s2 + $0x28] sm:$0xff]
      %v359 = vld [vmem:[%s2 + $0x30] sm:$0xff]
      %v360 = vld [vmem:[%s2 + $0x38] sm:$0xff]
      %362 = vset.pattern.permute.xlu0 0
      %363 = vperm.xlu0 %362, %v353
      %v364 = vpop.permute.xlu0 %363
      %367 = vset.pattern.permute.xlu0 0
      %368 = vperm.xlu0 %367, %v354
      %v369 = vpop.permute.xlu0 %368
      %372 = vset.pattern.permute.xlu0 0
      %373 = vperm.xlu0 %372, %v355
      %v374 = vpop.permute.xlu0 %373
      %377 = vset.pattern.permute.xlu0 0
      %378 = vperm.xlu0 %377, %v356
      %v379 = vpop.permute.xlu0 %378
      %382 = vset.pattern.permute.xlu0 0
      %383 = vperm.xlu0 %382, %v357
      %v384 = vpop.permute.xlu0 %383
      %387 = vset.pattern.permute.xlu0 0
      %388 = vperm.xlu0 %387, %v358
      %v389 = vpop.permute.xlu0 %388
      %392 = vset.pattern.permute.xlu0 0
      %393 = vperm.xlu0 %392, %v359
      %v394 = vpop.permute.xlu0 %393
      %397 = vset.pattern.permute.xlu0 0
      %398 = vperm.xlu0 %397, %v360
      %v399 = vpop.permute.xlu0 %398
      %v401 = vadd.f32 %v337, %v364
      %v402 = vadd.f32 %v338, %v364
      %v403 = vadd.f32 %v339, %v369
      %v404 = vadd.f32 %v340, %v369
      %v405 = vadd.f32 %v341, %v374
      %v406 = vadd.f32 %v342, %v374
      %v407 = vadd.f32 %v343, %v379
      %v408 = vadd.f32 %v344, %v379
      %v409 = vadd.f32 %v345, %v384
      %v410 = vadd.f32 %v346, %v384
      %v411 = vadd.f32 %v347, %v389
      %v412 = vadd.f32 %v348, %v389
      %v413 = vadd.f32 %v349, %v394
      %v414 = vadd.f32 %v350, %v394
      %v415 = vadd.f32 %v351, %v399
      %v416 = vadd.f32 %v352, %v399
      %v417 = vmax.f32 %v401, 0.0
      %v418 = vmax.f32 %v402, 0.0
      %v419 = vmax.f32 %v403, 0.0
      %v420 = vmax.f32 %v404, 0.0
      %v421 = vmax.f32 %v405, 0.0
      %v422 = vmax.f32 %v406, 0.0
      %v423 = vmax.f32 %v407, 0.0
      %v424 = vmax.f32 %v408, 0.0
      %v425 = vmax.f32 %v409, 0.0
      %v426 = vmax.f32 %v410, 0.0
      %v427 = vmax.f32 %v411, 0.0
      %v428 = vmax.f32 %v412, 0.0
      %v429 = vmax.f32 %v413, 0.0
      %v430 = vmax.f32 %v414, 0.0
      %v431 = vmax.f32 %v415, 0.0
      %v432 = vmax.f32 %v416, 0.0
      %v433 = vld [vmem:[%s3] sm:$0xf]
      %v434 = vld [vmem:[%s3 + $0x4] sm:$0xf]
      %v435 = vld [vmem:[%s3 + $0x8] sm:$0xf]
      %v436 = vld [vmem:[%s3 + $0xc] sm:$0xf]
      %v437 = vld [vmem:[%s3 + $0x10] sm:$0xf]
      %v438 = vld [vmem:[%s3 + $0x14] sm:$0xf]
      %v439 = vld [vmem:[%s3 + $0x18] sm:$0xf]
      %v440 = vld [vmem:[%s3 + $0x1c] sm:$0xf]
      %v441 = vld [vmem:[%s3 + $0x20] sm:$0xf]
      %v442 = vld [vmem:[%s3 + $0x24] sm:$0xf]
      %v443 = vld [vmem:[%s3 + $0x28] sm:$0xf]
      %v444 = vld [vmem:[%s3 + $0x2c] sm:$0xf]
      %v445 = vld [vmem:[%s3 + $0x30] sm:$0xf]
      %v446 = vld [vmem:[%s3 + $0x34] sm:$0xf]
      %v447 = vld [vmem:[%s3 + $0x38] sm:$0xf]
      %v448 = vld [vmem:[%s3 + $0x3c] sm:$0xf]
      %v449 = vpack.c.bf16 %v419, %v417
      %v450 = vpack.c.bf16 %v420, %v418
      %v451 = vpack.c.bf16 %v423, %v421
      %v452 = vpack.c.bf16 %v424, %v422
      %v453 = vpack.c.bf16 %v427, %v425
      %v454 = vpack.c.bf16 %v428, %v426
      %v455 = vpack.c.bf16 %v431, %v429
      %v456 = vpack.c.bf16 %v432, %v430
      %v457 = vld [vmem:[%s4] sm:$0xff]
      %v458 = vld [vmem:[%s4 + $0x8] sm:$0xff]
      %v459 = vld [vmem:[%s4 + $0x10] sm:$0xff]
      %v460 = vld [vmem:[%s4 + $0x18] sm:$0xff]
      %v461 = vld [vmem:[%s4 + $0x20] sm:$0xff]
      %v462 = vld [vmem:[%s4 + $0x28] sm:$0xff]
      %v463 = vld [vmem:[%s4 + $0x30] sm:$0xff]
      %v464 = vld [vmem:[%s4 + $0x38] sm:$0xff]
      %v465 = vld [vmem:[%s4 + $0x40] sm:$0xff]
      %v466 = vld [vmem:[%s4 + $0x48] sm:$0xff]
      %v467 = vld [vmem:[%s4 + $0x50] sm:$0xff]
      %v468 = vld [vmem:[%s4 + $0x58] sm:$0xff]
      %v469 = vld [vmem:[%s4 + $0x60] sm:$0xff]
      %v470 = vld [vmem:[%s4 + $0x68] sm:$0xff]
      %v471 = vld [vmem:[%s4 + $0x70] sm:$0xff]
      %v472 = vld [vmem:[%s4 + $0x78] sm:$0xff]
      %474 = vset.pattern.permute.xlu0 0
      %475 = vperm.xlu0 %474, %v457
      %v476 = vpop.permute.xlu0 %475
      %479 = vset.pattern.permute.xlu0 0
      %480 = vperm.xlu0 %479, %v458
      %v481 = vpop.permute.xlu0 %480
      %484 = vset.pattern.permute.xlu0 0
      %485 = vperm.xlu0 %484, %v459
      %v486 = vpop.permute.xlu0 %485
      %489 = vset.pattern.permute.xlu0 0
      %490 = vperm.xlu0 %489, %v460
      %v491 = vpop.permute.xlu0 %490
      %494 = vset.pattern.permute.xlu0 0
      %495 = vperm.xlu0 %494, %v461
      %v496 = vpop.permute.xlu0 %495
      %499 = vset.pattern.permute.xlu0 0
      %500 = vperm.xlu0 %499, %v462
      %v501 = vpop.permute.xlu0 %500
      %504 = vset.pattern.permute.xlu0 0
      %505 = vperm.xlu0 %504, %v463
      %v506 = vpop.permute.xlu0 %505
      %509 = vset.pattern.permute.xlu0 0
      %510 = vperm.xlu0 %509, %v464
      %v511 = vpop.permute.xlu0 %510
      %514 = vset.pattern.permute.xlu0 0
      %515 = vperm.xlu0 %514, %v465
      %v516 = vpop.permute.xlu0 %515
      %519 = vset.pattern.permute.xlu0 0
      %520 = vperm.xlu0 %519, %v466
      %v521 = vpop.permute.xlu0 %520
      %524 = vset.pattern.permute.xlu0 0
      %525 = vperm.xlu0 %524, %v467
      %v526 = vpop.permute.xlu0 %525
      %529 = vset.pattern.permute.xlu0 0
      %530 = vperm.xlu0 %529, %v468
      %v531 = vpop.permute.xlu0 %530
      %534 = vset.pattern.permute.xlu0 0
      %535 = vperm.xlu0 %534, %v469
      %v536 = vpop.permute.xlu0 %535
      %539 = vset.pattern.permute.xlu0 0
      %540 = vperm.xlu0 %539, %v470
      %v541 = vpop.permute.xlu0 %540
      %544 = vset.pattern.permute.xlu0 0
      %545 = vperm.xlu0 %544, %v471
      %v546 = vpop.permute.xlu0 %545
      %549 = vset.pattern.permute.xlu0 0
      %550 = vperm.xlu0 %549, %v472
      %v551 = vpop.permute.xlu0 %550
      %v569 = vunpack.c.l.b16 %v433
      %v570 = vunpack.c.l.b16 %v434
      %v571 = vunpack.c.l.b16 %v435
      %v572 = vunpack.c.l.b16 %v436
      %v573 = vunpack.c.l.b16 %v437
      %v574 = vunpack.c.l.b16 %v438
      %v575 = vunpack.c.l.b16 %v439
      %v576 = vunpack.c.l.b16 %v440
      %v577 = vunpack.c.l.b16 %v441
      %v578 = vunpack.c.l.b16 %v442
      %v579 = vunpack.c.l.b16 %v443
      %v580 = vunpack.c.l.b16 %v444
      %v581 = vunpack.c.l.b16 %v445
      %v582 = vunpack.c.l.b16 %v446
      %v583 = vunpack.c.l.b16 %v447
      %v584 = vunpack.c.l.b16 %v448
      %v585 = vpack.c.b16 %v570, %v569
      %v586 = vpack.c.b16 %v572, %v571
      %v587 = vpack.c.b16 %v574, %v573
      %v588 = vpack.c.b16 %v576, %v575
      %v589 = vpack.c.b16 %v578, %v577
      %v590 = vpack.c.b16 %v580, %v579
      %v591 = vpack.c.b16 %v582, %v581
      %v592 = vpack.c.b16 %v584, %v583
      %vm593 = vcmask 523264
      %v595 = vsel %vm593, %v585, 0
      %v598 = vsel %vm593, %v586, 0
      %v601 = vsel %vm593, %v587, 0
      %v604 = vsel %vm593, %v588, 0
      %v607 = vsel %vm593, %v589, 0
      %v610 = vsel %vm593, %v590, 0
      %v613 = vsel %vm593, %v591, 0
      %v616 = vsel %vm593, %v592, 0
      %618 = vmatpush.bf16.msra.mxu0 0
      %619 = vmatpush.bf16.msra.mxu0 0
      %620 = vmatpush.bf16.msra.mxu0 0
      %621 = vmatpush.bf16.msra.mxu0 0
      %622 = vmatpush.bf16.msra.mxu0 %v455
      %623 = vmatpush.bf16.msra.mxu0 %v453
      %624 = vmatpush.bf16.msra.mxu0 %v451
      %625 = vmatpush.bf16.msra.mxu0 %v449
      %626 = vmatmul.bf16.gmra.mxu0 %v595
      %v627 = vpop.f32.mrf.mxu0
      %v628 = vadd.f32 %v476, %v627
      %v629 = vpop.f32.mrf.mxu0
      %v630 = vadd.f32 %v481, %v629
      %631 = vmatmul.bf16.gmra.mxu0 %v598
      %v632 = vpop.f32.mrf.mxu0
      %v633 = vadd.f32 %v486, %v632
      %v634 = vpop.f32.mrf.mxu0
      %v635 = vadd.f32 %v491, %v634
      %636 = vmatmul.bf16.gmra.mxu0 %v601
      %v637 = vpop.f32.mrf.mxu0
      %v638 = vadd.f32 %v496, %v637
      %v639 = vpop.f32.mrf.mxu0
      %v640 = vadd.f32 %v501, %v639
      %641 = vmatmul.bf16.gmra.mxu0 %v604
      %v642 = vpop.f32.mrf.mxu0
      %v643 = vadd.f32 %v506, %v642
      %v644 = vpop.f32.mrf.mxu0
      %v645 = vadd.f32 %v511, %v644
      %646 = vmatmul.bf16.gmra.mxu0 %v607
      %v647 = vpop.f32.mrf.mxu0
      %v648 = vadd.f32 %v516, %v647
      %v649 = vpop.f32.mrf.mxu0
      %v650 = vadd.f32 %v521, %v649
      %651 = vmatmul.bf16.gmra.mxu0 %v610
      %v652 = vpop.f32.mrf.mxu0
      %v653 = vadd.f32 %v526, %v652
      %v654 = vpop.f32.mrf.mxu0
      %v655 = vadd.f32 %v531, %v654
      %656 = vmatmul.bf16.gmra.mxu0 %v613
      %v657 = vpop.f32.mrf.mxu0
      %v658 = vadd.f32 %v536, %v657
      %v659 = vpop.f32.mrf.mxu0
      %v660 = vadd.f32 %v541, %v659
      %661 = vmatmul.bf16.gmra.mxu0 %v616
      %v662 = vpop.f32.mrf.mxu0
      %v663 = vadd.f32 %v546, %v662
      %v664 = vpop.f32.mrf.mxu0
      %v665 = vadd.f32 %v551, %v664
      %666 = vdwg.mxu0
      %667 = vmatpush.bf16.msra.mxu0 0
      %668 = vmatpush.bf16.msra.mxu0 0
      %669 = vmatpush.bf16.msra.mxu0 0
      %670 = vmatpush.bf16.msra.mxu0 0
      %671 = vmatpush.bf16.msra.mxu0 %v456
      %672 = vmatpush.bf16.msra.mxu0 %v454
      %673 = vmatpush.bf16.msra.mxu0 %v452
      %674 = vmatpush.bf16.msra.mxu0 %v450
      %675 = vmatmul.bf16.gmra.mxu0 %v595
      %v676 = vpop.f32.mrf.mxu0
      %v677 = vadd.f32 %v476, %v676
      %v678 = vpop.f32.mrf.mxu0
      %v679 = vadd.f32 %v481, %v678
      %680 = vmatmul.bf16.gmra.mxu0 %v598
      %v681 = vpop.f32.mrf.mxu0
      %v682 = vadd.f32 %v486, %v681
      %v683 = vpop.f32.mrf.mxu0
      %v684 = vadd.f32 %v491, %v683
      %685 = vmatmul.bf16.gmra.mxu0 %v601
      %v686 = vpop.f32.mrf.mxu0
      %v687 = vadd.f32 %v496, %v686
      %v688 = vpop.f32.mrf.mxu0
      %v689 = vadd.f32 %v501, %v688
      %690 = vmatmul.bf16.gmra.mxu0 %v604
      %v691 = vpop.f32.mrf.mxu0
      %v692 = vadd.f32 %v506, %v691
      %v693 = vpop.f32.mrf.mxu0
      %v694 = vadd.f32 %v511, %v693
      %695 = vmatmul.bf16.gmra.mxu0 %v607
      %v696 = vpop.f32.mrf.mxu0
      %v697 = vadd.f32 %v516, %v696
      %v698 = vpop.f32.mrf.mxu0
      %v699 = vadd.f32 %v521, %v698
      %700 = vmatmul.bf16.gmra.mxu0 %v610
      %v701 = vpop.f32.mrf.mxu0
      %v702 = vadd.f32 %v526, %v701
      %v703 = vpop.f32.mrf.mxu0
      %v704 = vadd.f32 %v531, %v703
      %705 = vmatmul.bf16.gmra.mxu0 %v613
      %v706 = vpop.f32.mrf.mxu0
      %v707 = vadd.f32 %v536, %v706
      %v708 = vpop.f32.mrf.mxu0
      %v709 = vadd.f32 %v541, %v708
      %710 = vmatmul.bf16.gmra.mxu0 %v616
      %v711 = vpop.f32.mrf.mxu0
      %v712 = vadd.f32 %v546, %v711
      %v713 = vpop.f32.mrf.mxu0
      %v714 = vadd.f32 %v551, %v713
      %715 = vdwg.mxu0
      %716 = vst [vmem:[%s262] sm:$0xff] %v628
      %717 = vst [vmem:[%s262 + $0x8] sm:$0xff] %v677
      %718 = vst [vmem:[%s262 + $0x10] sm:$0xff] %v630
      %719 = vst [vmem:[%s262 + $0x18] sm:$0xff] %v679
      %720 = vst [vmem:[%s262 + $0x20] sm:$0xff] %v633
      %721 = vst [vmem:[%s262 + $0x28] sm:$0xff] %v682
      %722 = vst [vmem:[%s262 + $0x30] sm:$0xff] %v635
      %723 = vst [vmem:[%s262 + $0x38] sm:$0xff] %v684
      %724 = vst [vmem:[%s262 + $0x40] sm:$0xff] %v638
      %725 = vst [vmem:[%s262 + $0x48] sm:$0xff] %v687
      %726 = vst [vmem:[%s262 + $0x50] sm:$0xff] %v640
      %727 = vst [vmem:[%s262 + $0x58] sm:$0xff] %v689
      %728 = vst [vmem:[%s262 + $0x60] sm:$0xff] %v643
      %729 = vst [vmem:[%s262 + $0x68] sm:$0xff] %v692
      %730 = vst [vmem:[%s262 + $0x70] sm:$0xff] %v645
      %731 = vst [vmem:[%s262 + $0x78] sm:$0xff] %v694
      %732 = vst [vmem:[%s262 + $0x80] sm:$0xff] %v648
      %733 = vst [vmem:[%s262 + $0x88] sm:$0xff] %v697
      %734 = vst [vmem:[%s262 + $0x90] sm:$0xff] %v650
      %735 = vst [vmem:[%s262 + $0x98] sm:$0xff] %v699
      %736 = vst [vmem:[%s262 + $0xa0] sm:$0xff] %v653
      %737 = vst [vmem:[%s262 + $0xa8] sm:$0xff] %v702
      %738 = vst [vmem:[%s262 + $0xb0] sm:$0xff] %v655
      %739 = vst [vmem:[%s262 + $0xb8] sm:$0xff] %v704
      %740 = vst [vmem:[%s262 + $0xc0] sm:$0xff] %v658
      %741 = vst [vmem:[%s262 + $0xc8] sm:$0xff] %v707
      %742 = vst [vmem:[%s262 + $0xd0] sm:$0xff] %v660
      %743 = vst [vmem:[%s262 + $0xd8] sm:$0xff] %v709
      %744 = vst [vmem:[%s262 + $0xe0] sm:$0xff] %v663
      %745 = vst [vmem:[%s262 + $0xe8] sm:$0xff] %v712
      %746 = vst [vmem:[%s262 + $0xf0] sm:$0xff] %v665
      %747 = vst [vmem:[%s262 + $0xf8] sm:$0xff] %v714
      %s748 = smul.u32 2, %s21
      %p749 = scmp.lt.s32.totalorder %s20, 1
      %s750 = scalar_select %p749, %s20, 1
      %p751 = scmp.lt.s32.totalorder %s748, 1
      %s752 = scalar_select %p751, %s748, 1
      %s753 = smul.addr %s750, 32
      %s754 = sadd.s32 %s752, %s753
      %s755 = smul.addr %s754, 8
      %s756 = scalar_lea.vmem %s5, %s755
      // Predicated region
      $region41: #{projection_head.3} parent=39 // pred_check
        %p757 = pneg %p160
      $region42: #{projection_head.3} parent=39 // pred_check_branch
        %759 = sbr.rel (%p757) target = $region44
      $region43: #{projection_head.3} parent=39 // pred_region
        %s760 = smul.u32 2, %s21
      $region44: #{projection_head.3} parent=39 // pred_fallthru
        _
    $region40: #{projection_head.3} parent=5 // pred_fallthru
      _
    %p761 = scmp.le.s32.totalorder 2, %s11
    // Predicated region
    $region45: #{projection_head.3} parent=5 // pred_check
      %p762 = pneg %p761
    $region46: #{projection_head.3} parent=5 // pred_check_branch
      %764 = sbr.rel (%p762) target = $region48
    $region47: #{projection_head.3} parent=5 // pred_region
      %s765 = ssub.s32 %s11, 2
      // Predicated region
      $region49: #{projection_head.3} parent=47 // pred_check
        %p766 = pneg %p166
      $region50: #{projection_head.3} parent=47 // pred_check_branch
        %768 = sbr.rel (%p766) target = $region52
      $region51: #{projection_head.3} parent=47 // pred_region
        %s769 = smul.u32 2, %s23
        %p770 = scmp.lt.s32.totalorder %s22, 1
        %s771 = scalar_select %p770, %s22, 1
        %p772 = scmp.lt.s32.totalorder %s769, 1
        %s773 = scalar_select %p772, %s769, 1
        %s774 = smul.addr %s771, 32
        %s775 = sadd.s32 %s773, %s774
        %s776 = smul.addr %s775, 8
        %s777 = scalar_lea.vmem %s5, %s776
      $region52: #{projection_head.3} parent=47 // pred_fallthru
        _
    $region48: #{projection_head.3} parent=5 // pred_fallthru
      _
  $region6: #{projection_head.3} parent=0 // loop_footer
    %s15 = sadd.s32 1, %s11
  $region7: #{projection_head.3} parent=0 // loop_footer_branch
    %10 = sbr.rel target = $region3
  $region8: #{projection_head.3} parent=0 // loop_exit
    _

// kernel: projection_head.2
$region0: #{projection_head.2}
  #allocation0 [shape = 'u32[]', space=smem, size = 0x4, offset = 0x4, fixed_abs, tag = 'smem constant byte address 0x4 - core index']
  #allocation1 [shape = 'u32[72,128]{1,0:T(1,128)}', space=vmem, size = 0x9000, scoped, tag = 'internal scratch']
  %s0 = inlined_call_operand.vmem [shape: f32[2,128,256], index: 0, kind: input, shape index: {}]
  %s1 = inlined_call_operand.vmem [shape: bf16[64,128], index: 1, kind: input, shape index: {}]
  %s2 = inlined_call_operand.vmem [shape: f32[64,1], index: 2, kind: input, shape index: {}]
  %s3 = inlined_call_operand.vmem [shape: f32[2,1,64,2], index: 3, kind: output, shape index: {0}]
  %s4 = inlined_call_operand.vmem [shape: bf16[2,64,256], index: 4, kind: output, shape index: {1}]
  %5 = xla_tuple %s3, %s4
  %s6 = sld [smem:[#allocation0]]
  $region53: #{projection_head.2} parent=0
    _
  %s8 = ssub.s32 1, %s6
  %s9 = scalar_select 0, %s8, %s6
  loop: start=0, step=1, limit=4
  $region2: #{projection_head.2} parent=0 // loop_pre_header
    _
  $region3: #{projection_head.2} parent=0 // loop_header
    %s11 = sphi 0, %s15
    %p12 = scmp.ge.s32.totalorder %s11, 4
    %s18 = sphi 0, %s30
    %s19 = sphi 0, %s26
    %s20 = sphi 0, %s18
    %s21 = sphi 0, %s19
    %s22 = sphi 0, %s20
    %s23 = sphi 0, %s21
    %s35 = sphi 0, %s37
    %s38 = sphi 0, %s35
    %s39 = sphi 0, %s38
    %s55 = sphi 0, %s39
    %s59 = sphi 0, %s59
    %s61 = sphi 0, %s59
    %s62 = sphi 0, %s61
    %s76 = sphi 0, %s62
    %s80 = sphi 0, %s80
    %s82 = sphi 0, %s80
    %s83 = sphi 0, %s82
    %s97 = sphi 0, %s83
    %s105 = sphi 0, %s107
    %s108 = sphi 0, %s105
    %s109 = sphi 0, %s108
    %s125 = sphi 0, %s109
    %s133 = sphi 0, %s135
    %s136 = sphi 0, %s133
    %s137 = sphi 0, %s136
    %s153 = sphi 0, %s137
  $region4: #{projection_head.2} parent=0 // loop_header_branch
    %14 = sbr.rel (%p12) target = $region8
  $region5: #{projection_head.2} parent=0 // loop_body
    %s16 = ssub.s32 %s11, 1
    %s17 = ssub.s32 %s11, 2
    %s24 = sadd.s32 1, %s19
    %p25 = scmp.ge.s32.totalorder %s24, 1
    %s26 = scalar_select %p25, 0, %s24
    %s27 = sadd.s32 1, %s18
    %s28 = scalar_select %p25, %s27, %s18
    %p29 = scmp.ge.s32.totalorder %s28, 2
    %s30 = scalar_select %p29, 0, %s28
    %s31 = ssub.s32 %s18, %s30
    %s32 = ssub.s32 %s19, %s26
    %s33 = sor.u32 %s31, %s32
    %p34 = scmp.eq.s32.totalorder %s33, 0
    %s36 = sadd.s32 %s35, 1
    %s37 = scalar_select %p34, %s35, %s36
    %p40 = pneg %p34
    %p41 = scmp.eq.s32.totalorder %s11, 1
    %p42 = por %p40, %p41
    %p43 = scmp.ne.s32.totalorder %s35, %s38
    %p44 = scmp.eq.s32.totalorder %s11, 0
    %p45 = por %p43, %p44
    %p46 = scmp.ne.s32.totalorder %s35, %s38
    %p47 = scmp.eq.s32.totalorder %s16, 1
    %p48 = por %p46, %p47
    %p49 = scmp.ne.s32.totalorder %s38, %s39
    %p50 = scmp.eq.s32.totalorder %s16, 0
    %p51 = por %p49, %p50
    %p52 = scmp.ne.s32.totalorder %s38, %s39
    %p53 = scmp.eq.s32.totalorder %s17, 1
    %p54 = por %p52, %p53
    %p56 = scmp.ne.s32.totalorder %s39, %s55
    %p57 = scmp.eq.s32.totalorder %s17, 0
    %p58 = por %p56, %p57
    %s60 = sadd.s32 %s59, 1
    %p63 = scmp.eq.s32.totalorder %s11, 1
    %p64 = scmp.ne.s32.totalorder %s59, %s61
    %p65 = scmp.eq.s32.totalorder %s11, 0
    %p66 = por %p64, %p65
    %p67 = scmp.ne.s32.totalorder %s59, %s61
    %p68 = scmp.eq.s32.totalorder %s16, 1
    %p69 = por %p67, %p68
    %p70 = scmp.ne.s32.totalorder %s61, %s62
    %p71 = scmp.eq.s32.totalorder %s16, 0
    %p72 = por %p70, %p71
    %p73 = scmp.ne.s32.totalorder %s61, %s62
    %p74 = scmp.eq.s32.totalorder %s17, 1
    %p75 = por %p73, %p74
    %p77 = scmp.ne.s32.totalorder %s62, %s76
    %p78 = scmp.eq.s32.totalorder %s17, 0
    %p79 = por %p77, %p78
    %s81 = sadd.s32 %s80, 1
    %p84 = scmp.eq.s32.totalorder %s11, 1
    %p85 = scmp.ne.s32.totalorder %s80, %s82
    %p86 = scmp.eq.s32.totalorder %s11, 0
    %p87 = por %p85, %p86
    %p88 = scmp.ne.s32.totalorder %s80, %s82
    %p89 = scmp.eq.s32.totalorder %s16, 1
    %p90 = por %p88, %p89
    %p91 = scmp.ne.s32.totalorder %s82, %s83
    %p92 = scmp.eq.s32.totalorder %s16, 0
    %p93 = por %p91, %p92
    %p94 = scmp.ne.s32.totalorder %s82, %s83
    %p95 = scmp.eq.s32.totalorder %s17, 1
    %p96 = por %p94, %p95
    %p98 = scmp.ne.s32.totalorder %s83, %s97
    %p99 = scmp.eq.s32.totalorder %s17, 0
    %p100 = por %p98, %p99
    %s101 = ssub.s32 %s18, %s30
    %s102 = ssub.s32 %s19, %s26
    %s103 = sor.u32 %s101, %s102
    %p104 = scmp.eq.s32.totalorder %s103, 0
    %s106 = sadd.s32 %s105, 1
    %s107 = scalar_select %p104, %s105, %s106
    %p110 = pneg %p104
    %p111 = scmp.eq.s32.totalorder %s11, 1
    %p112 = por %p110, %p111
    %p113 = scmp.ne.s32.totalorder %s105, %s108
    %p114 = scmp.eq.s32.totalorder %s11, 0
    %p115 = por %p113, %p114
    %p116 = scmp.ne.s32.totalorder %s105, %s108
    %p117 = scmp.eq.s32.totalorder %s16, 1
    %p118 = por %p116, %p117
    %p119 = scmp.ne.s32.totalorder %s108, %s109
    %p120 = scmp.eq.s32.totalorder %s16, 0
    %p121 = por %p119, %p120
    %p122 = scmp.ne.s32.totalorder %s108, %s109
    %p123 = scmp.eq.s32.totalorder %s17, 1
    %p124 = por %p122, %p123
    %p126 = scmp.ne.s32.totalorder %s109, %s125
    %p127 = scmp.eq.s32.totalorder %s17, 0
    %p128 = por %p126, %p127
    %s129 = ssub.s32 %s18, %s30
    %s130 = ssub.s32 %s19, %s26
    %s131 = sor.u32 %s129, %s130
    %p132 = scmp.eq.s32.totalorder %s131, 0
    %s134 = sadd.s32 %s133, 1
    %s135 = scalar_select %p132, %s133, %s134
    %p138 = pneg %p132
    %p139 = scmp.eq.s32.totalorder %s11, 1
    %p140 = por %p138, %p139
    %p141 = scmp.ne.s32.totalorder %s133, %s136
    %p142 = scmp.eq.s32.totalorder %s11, 0
    %p143 = por %p141, %p142
    %p144 = scmp.ne.s32.totalorder %s133, %s136
    %p145 = scmp.eq.s32.totalorder %s16, 1
    %p146 = por %p144, %p145
    %p147 = scmp.ne.s32.totalorder %s136, %s137
    %p148 = scmp.eq.s32.totalorder %s16, 0
    %p149 = por %p147, %p148
    %p150 = scmp.ne.s32.totalorder %s136, %s137
    %p151 = scmp.eq.s32.totalorder %s17, 1
    %p152 = por %p150, %p151
    %p154 = scmp.ne.s32.totalorder %s137, %s153
    %p155 = scmp.eq.s32.totalorder %s17, 0
    %p156 = por %p154, %p155
    %p157 = scmp.le.s32.totalorder 1, %s11
    %p158 = scmp.lt.s32.totalorder %s11, 3
    %p159 = pnand %p157, %p158
    %p160 = pneg %p159
    // Predicated region
    $region9: #{projection_head.2} parent=5 // pred_check
      _
    $region10: #{projection_head.2} parent=5 // pred_check_branch
      %162 = sbr.rel (%p159) target = $region12
    $region11: #{projection_head.2} parent=5 // pred_region
      %s163 = ssub.s32 %s11, 1
      // Predicated region
      $region13: #{projection_head.2} parent=11 // pred_check
        %p164 = pneg %p72
      $region14: #{projection_head.2} parent=11 // pred_check_branch
        %166 = sbr.rel (%p164) target = $region16
      $region15: #{projection_head.2} parent=11 // pred_region
        _
      $region16: #{projection_head.2} parent=11 // pred_fallthru
        _
      // Predicated region
      $region17: #{projection_head.2} parent=11 // pred_check
        %p167 = pneg %p93
      $region18: #{projection_head.2} parent=11 // pred_check_branch
        %169 = sbr.rel (%p167) target = $region20
      $region19: #{projection_head.2} parent=11 // pred_region
        _
      $region20: #{projection_head.2} parent=11 // pred_fallthru
        _
    $region12: #{projection_head.2} parent=5 // pred_fallthru
      _
    %p170 = scmp.lt.s32.totalorder %s11, 2
    // Predicated region
    $region21: #{projection_head.2} parent=5 // pred_check
      %p171 = pneg %p170
    $region22: #{projection_head.2} parent=5 // pred_check_branch
      %173 = sbr.rel (%p171) target = $region24
    $region23: #{projection_head.2} parent=5 // pred_region
      // Predicated region
      $region25: #{projection_head.2} parent=23 // pred_check
        %p174 = pneg %p45
      $region26: #{projection_head.2} parent=23 // pred_check_branch
        %176 = sbr.rel (%p174) target = $region28
      $region27: #{projection_head.2} parent=23 // pred_region
        %s177 = smul.u32 2, %s19
        %p178 = scmp.lt.s32.totalorder %s18, 1
        %s179 = scalar_select %p178, %s18, 1
        %p180 = scmp.lt.s32.totalorder %s177, 1
        %s181 = scalar_select %p180, %s177, 1
        %s182 = smul.addr %s179, 32
        %s183 = sadd.s32 %s181, %s182
        %s184 = smul.addr %s183, 8
        %s185 = scalar_lea.vmem %s0, %s184
        %s186 = smul.u32 2, %s19
      $region28: #{projection_head.2} parent=23 // pred_fallthru
        _
    $region24: #{projection_head.2} parent=5 // pred_fallthru
      _
    %p187 = scmp.le.s32.totalorder 1, %s11
    %p188 = scmp.lt.s32.totalorder %s11, 3
    %p189 = pnand %p187, %p188
    %p190 = pneg %p189
    // Predicated region
    $region29: #{projection_head.2} parent=5 // pred_check
      _
    $region30: #{projection_head.2} parent=5 // pred_check_branch
      %192 = sbr.rel (%p189) target = $region32
    $region31: #{projection_head.2} parent=5 // pred_region
      %s193 = ssub.s32 %s11, 1
      %s194 = smul.u32 2, %s21
      %p195 = scmp.lt.s32.totalorder %s20, 1
      %s196 = scalar_select %p195, %s20, 1
      %p197 = scmp.lt.s32.totalorder %s194, 1
      %s198 = scalar_select %p197, %s194, 1
      %s199 = smul.addr %s196, 32
      %s200 = sadd.s32 %s198, %s199
      %s201 = smul.addr %s200, 8
      %s202 = scalar_lea.vmem %s0, %s201
      %p203 = pneg %p51
      %p204 = pneg %p48
      %p205 = pneg %p72
      %p206 = pneg %p69
      %p207 = pneg %p93
      %p208 = pneg %p90
      %p209 = pneg %p121
      %p210 = pneg %p118
      %p211 = scmp.lt.s32.totalorder %s20, 1
      %s212 = scalar_select %p211, %s20, 1
      %p213 = scmp.lt.s32.totalorder %s21, 0
      %s214 = scalar_select %p213, %s21, 0
      %s215 = smul.addr %s214, 8
      %s216 = smul.addr %s212, 8
      %s217 = sadd.s32 %s215, %s216
      %s218 = smul.addr %s217, 8
      %s219 = scalar_lea.vmem %s3, %s218
      %p220 = pneg %p149
      %p221 = pneg %p146
      %s222 = smul.u32 2, %s21
      %p223 = scmp.lt.s32.totalorder %s20, 1
      %s224 = scalar_select %p223, %s20, 1
      %p225 = scmp.lt.s32.totalorder %s222, 1
      %s226 = scalar_select %p225, %s222, 1
      %s227 = smul.addr %s224, 16
      %s228 = sadd.s32 %s226, %s227
      %s229 = smul.addr %s228, 4
      %s230 = scalar_lea.vmem %s4, %s229
      %s231 = smul.u32 2, %s21
      %p232 = scmp.lt.s32.totalorder %s20, 1
      %s233 = scalar_select %p232, %s20, 1
      %p234 = scmp.lt.s32.totalorder %s231, 1
      %s235 = scalar_select %p234, %s231, 1
      %s236 = smul.addr %s233, 32
      %s237 = sadd.s32 %s235, %s236
      %s238 = smul.addr %s237, 8
      %s239 = scalar_lea.vmem %s0, %s238
      %s240 = smul.u32 2, %s21
      %p241 = scmp.lt.s32.totalorder %s20, 1
      %s242 = scalar_select %p241, %s20, 1
      %p243 = scmp.lt.s32.totalorder %s21, 0
      %s244 = scalar_select %p243, %s21, 0
      %s245 = smul.addr %s244, 8
      %s246 = smul.addr %s242, 8
      %s247 = sadd.s32 %s245, %s246
      %s248 = smul.addr %s247, 8
      %s249 = scalar_lea.vmem %s3, %s248
      %s250 = smul.u32 2, %s21
      %p251 = scmp.lt.s32.totalorder %s20, 1
      %s252 = scalar_select %p251, %s20, 1
      %p253 = scmp.lt.s32.totalorder %s250, 1
      %s254 = scalar_select %p253, %s250, 1
      %s255 = smul.addr %s252, 16
      %s256 = sadd.s32 %s254, %s255
      %s257 = smul.addr %s256, 4
      %s258 = scalar_lea.vmem %s4, %s257
      %s259 = smul.u32 2, %s21
      %v260 = vld [vmem:[%s239] sm:$0xff]
      %v261 = vld [vmem:[%s239 + $0x8] sm:$0xff]
      %v262 = vld [vmem:[%s239 + $0x10] sm:$0xff]
      %v263 = vld [vmem:[%s239 + $0x18] sm:$0xff]
      %v264 = vld [vmem:[%s239 + $0x20] sm:$0xff]
      %v265 = vld [vmem:[%s239 + $0x28] sm:$0xff]
      %v266 = vld [vmem:[%s239 + $0x30] sm:$0xff]
      %v267 = vld [vmem:[%s239 + $0x38] sm:$0xff]
      %v268 = vld [vmem:[%s239 + $0x40] sm:$0xff]
      %v269 = vld [vmem:[%s239 + $0x48] sm:$0xff]
      %v270 = vld [vmem:[%s239 + $0x50] sm:$0xff]
      %v271 = vld [vmem:[%s239 + $0x58] sm:$0xff]
      %v272 = vld [vmem:[%s239 + $0x60] sm:$0xff]
      %v273 = vld [vmem:[%s239 + $0x68] sm:$0xff]
      %v274 = vld [vmem:[%s239 + $0x70] sm:$0xff]
      %v275 = vld [vmem:[%s239 + $0x78] sm:$0xff]
      %v276 = vld [vmem:[%s239 + $0x80] sm:$0xff]
      %v277 = vld [vmem:[%s239 + $0x88] sm:$0xff]
      %v278 = vld [vmem:[%s239 + $0x90] sm:$0xff]
      %v279 = vld [vmem:[%s239 + $0x98] sm:$0xff]
      %v280 = vld [vmem:[%s239 + $0xa0] sm:$0xff]
      %v281 = vld [vmem:[%s239 + $0xa8] sm:$0xff]
      %v282 = vld [vmem:[%s239 + $0xb0] sm:$0xff]
      %v283 = vld [vmem:[%s239 + $0xb8] sm:$0xff]
      %v284 = vld [vmem:[%s239 + $0xc0] sm:$0xff]
      %v285 = vld [vmem:[%s239 + $0xc8] sm:$0xff]
      %v286 = vld [vmem:[%s239 + $0xd0] sm:$0xff]
      %v287 = vld [vmem:[%s239 + $0xd8] sm:$0xff]
      %v288 = vld [vmem:[%s239 + $0xe0] sm:$0xff]
      %v289 = vld [vmem:[%s239 + $0xe8] sm:$0xff]
      %v290 = vld [vmem:[%s239 + $0xf0] sm:$0xff]
      %v291 = vld [vmem:[%s239 + $0xf8] sm:$0xff]
      %v292 = vpack.c.bf16 %v262, %v260
      %v293 = vpack.c.bf16 %v263, %v261
      %v294 = vpack.c.bf16 %v266, %v264
      %v295 = vpack.c.bf16 %v267, %v265
      %v296 = vpack.c.bf16 %v270, %v268
      %v297 = vpack.c.bf16 %v271, %v269
      %v298 = vpack.c.bf16 %v274, %v272
      %v299 = vpack.c.bf16 %v275, %v273
      %v300 = vpack.c.bf16 %v278, %v276
      %v301 = vpack.c.bf16 %v279, %v277
      %v302 = vpack.c.bf16 %v282, %v280
      %v303 = vpack.c.bf16 %v283, %v281
      %v304 = vpack.c.bf16 %v286, %v284
      %v305 = vpack.c.bf16 %v287, %v285
      %v306 = vpack.c.bf16 %v290, %v288
      %v307 = vpack.c.bf16 %v291, %v289
      %v308 = vld [vmem:[%s1] sm:$0xf]
      %v309 = vld [vmem:[%s1 + $0x4] sm:$0xf]
      %v310 = vld [vmem:[%s1 + $0x8] sm:$0xf]
      %v311 = vld [vmem:[%s1 + $0xc] sm:$0xf]
      %v312 = vld [vmem:[%s1 + $0x10] sm:$0xf]
      %v313 = vld [vmem:[%s1 + $0x14] sm:$0xf]
      %v314 = vld [vmem:[%s1 + $0x18] sm:$0xf]
      %v315 = vld [vmem:[%s1 + $0x1c] sm:$0xf]
      %v316 = vld [vmem:[%s2] sm:$0xff]
      %v317 = vld [vmem:[%s2 + $0x8] sm:$0xff]
      %v318 = vld [vmem:[%s2 + $0x10] sm:$0xff]
      %v319 = vld [vmem:[%s2 + $0x18] sm:$0xff]
      %v320 = vld [vmem:[%s2 + $0x20] sm:$0xff]
      %v321 = vld [vmem:[%s2 + $0x28] sm:$0xff]
      %v322 = vld [vmem:[%s2 + $0x30] sm:$0xff]
      %v323 = vld [vmem:[%s2 + $0x38] sm:$0xff]
      %325 = vset.pattern.permute.xlu0 0
      %326 = vperm.xlu0 %325, %v316
      %v327 = vpop.permute.xlu0 %326
      %330 = vset.pattern.permute.xlu0 0
      %331 = vperm.xlu0 %330, %v317
      %v332 = vpop.permute.xlu0 %331
      %335 = vset.pattern.permute.xlu0 0
      %336 = vperm.xlu0 %335, %v318
      %v337 = vpop.permute.xlu0 %336
      %340 = vset.pattern.permute.xlu0 0
      %341 = vperm.xlu0 %340, %v319
      %v342 = vpop.permute.xlu0 %341
      %345 = vset.pattern.permute.xlu0 0
      %346 = vperm.xlu0 %345, %v320
      %v347 = vpop.permute.xlu0 %346
      %350 = vset.pattern.permute.xlu0 0
      %351 = vperm.xlu0 %350, %v321
      %v352 = vpop.permute.xlu0 %351
      %355 = vset.pattern.permute.xlu0 0
      %356 = vperm.xlu0 %355, %v322
      %v357 = vpop.permute.xlu0 %356
      %360 = vset.pattern.permute.xlu0 0
      %361 = vperm.xlu0 %360, %v323
      %v362 = vpop.permute.xlu0 %361
      %v372 = vunpack.c.l.b16 %v308
      %v373 = vunpack.c.l.b16 %v309
      %v374 = vunpack.c.l.b16 %v310
      %v375 = vunpack.c.l.b16 %v311
      %v376 = vunpack.c.l.b16 %v312
      %v377 = vunpack.c.l.b16 %v313
      %v378 = vunpack.c.l.b16 %v314
      %v379 = vunpack.c.l.b16 %v315
      %v380 = vpack.c.b16 %v373, %v372
      %v381 = vpack.c.b16 %v375, %v374
      %v382 = vpack.c.b16 %v377, %v376
      %v383 = vpack.c.b16 %v379, %v378
      %388 = vmatpush.bf16.msra.mxu0 %v306
      %389 = vmatpush.bf16.msra.mxu0 %v304
      %390 = vmatpush.bf16.msra.mxu0 %v302
      %391 = vmatpush.bf16.msra.mxu0 %v300
      %392 = vmatpush.bf16.msra.mxu0 %v298
      %393 = vmatpush.bf16.msra.mxu0 %v296
      %394 = vmatpush.bf16.msra.mxu0 %v294
      %395 = vmatpush.bf16.msra.mxu0 %v292
      %396 = vmatmul.bf16.gmra.mxu0 %v380
      %v397 = vpop.f32.mrf.mxu0
      %v398 = vadd.f32 %v327, %v397
      %v399 = vpop.f32.mrf.mxu0
      %v400 = vadd.f32 %v332, %v399
      %401 = vmatmul.bf16.gmra.mxu0 %v381
      %v402 = vpop.f32.mrf.mxu0
      %v403 = vadd.f32 %v337, %v402
      %v404 = vpop.f32.mrf.mxu0
      %v405 = vadd.f32 %v342, %v404
      %406 = vmatmul.bf16.gmra.mxu0 %v382
      %v407 = vpop.f32.mrf.mxu0
      %v408 = vadd.f32 %v347, %v407
      %v409 = vpop.f32.mrf.mxu0
      %v410 = vadd.f32 %v352, %v409
      %411 = vmatmul.bf16.gmra.mxu0 %v383
      %v412 = vpop.f32.mrf.mxu0
      %v413 = vadd.f32 %v357, %v412
      %v414 = vpop.f32.mrf.mxu0
      %v415 = vadd.f32 %v362, %v414
      %416 = vdwg.mxu0
      %417 = vmatpush.bf16.msra.mxu0 %v307
      %418 = vmatpush.bf16.msra.mxu0 %v305
      %419 = vmatpush.bf16.msra.mxu0 %v303
      %420 = vmatpush.bf16.msra.mxu0 %v301
      %421 = vmatpush.bf16.msra.mxu0 %v299
      %422 = vmatpush.bf16.msra.mxu0 %v297
      %423 = vmatpush.bf16.msra.mxu0 %v295
      %424 = vmatpush.bf16.msra.mxu0 %v293
      %425 = vmatmul.bf16.gmra.mxu0 %v380
      %v426 = vpop.f32.mrf.mxu0
      %v427 = vadd.f32 %v327, %v426
      %v428 = vpop.f32.mrf.mxu0
      %v429 = vadd.f32 %v332, %v428
      %430 = vmatmul.bf16.gmra.mxu0 %v381
      %v431 = vpop.f32.mrf.mxu0
      %v432 = vadd.f32 %v337, %v431
      %v433 = vpop.f32.mrf.mxu0
      %v434 = vadd.f32 %v342, %v433
      %435 = vmatmul.bf16.gmra.mxu0 %v382
      %v436 = vpop.f32.mrf.mxu0
      %v437 = vadd.f32 %v347, %v436
      %v438 = vpop.f32.mrf.mxu0
      %v439 = vadd.f32 %v352, %v438
      %440 = vmatmul.bf16.gmra.mxu0 %v383
      %v441 = vpop.f32.mrf.mxu0
      %v442 = vadd.f32 %v357, %v441
      %v443 = vpop.f32.mrf.mxu0
      %v444 = vadd.f32 %v362, %v443
      %445 = vdwg.mxu0
      %v446 = vpack.c.bf16 %v427, %v398
      %v447 = vpack.c.bf16 %v429, %v400
      %v448 = vpack.c.bf16 %v432, %v403
      %v449 = vpack.c.bf16 %v434, %v405
      %v450 = vpack.c.bf16 %v437, %v408
      %v451 = vpack.c.bf16 %v439, %v410
      %v452 = vpack.c.bf16 %v442, %v413
      %v453 = vpack.c.bf16 %v444, %v415
      %454 = vst [vmem:[%s258] sm:$0xff] %v446
      %455 = vst [vmem:[%s258 + $0x8] sm:$0xff] %v447
      %456 = vst [vmem:[%s258 + $0x10] sm:$0xff] %v448
      %457 = vst [vmem:[%s258 + $0x18] sm:$0xff] %v449
      %458 = vst [vmem:[%s258 + $0x20] sm:$0xff] %v450
      %459 = vst [vmem:[%s258 + $0x28] sm:$0xff] %v451
      %460 = vst [vmem:[%s258 + $0x30] sm:$0xff] %v452
      %461 = vst [vmem:[%s258 + $0x38] sm:$0xff] %v453
      %v462 = vadd.f32 %v398, %v427
      %463 = vadd.xlane.f32.xlu0 %v462
      %v464 = vpop.xlane.xlu0 %463
      %v465 = vadd.f32 %v400, %v429
      %466 = vadd.xlane.f32.xlu0 %v465
      %v467 = vpop.xlane.xlu0 %466
      %v468 = vadd.f32 %v403, %v432
      %469 = vadd.xlane.f32.xlu0 %v468
      %v470 = vpop.xlane.xlu0 %469
      %v471 = vadd.f32 %v405, %v434
      %472 = vadd.xlane.f32.xlu0 %v471
      %v473 = vpop.xlane.xlu0 %472
      %v474 = vadd.f32 %v408, %v437
      %475 = vadd.xlane.f32.xlu0 %v474
      %v476 = vpop.xlane.xlu0 %475
      %v477 = vadd.f32 %v410, %v439
      %478 = vadd.xlane.f32.xlu0 %v477
      %v479 = vpop.xlane.xlu0 %478
      %v480 = vadd.f32 %v413, %v442
      %481 = vadd.xlane.f32.xlu0 %v480
      %v482 = vpop.xlane.xlu0 %481
      %v483 = vadd.f32 %v415, %v444
      %484 = vadd.xlane.f32.xlu0 %v483
      %v485 = vpop.xlane.xlu0 %484
      %vm486 = vcmask 7168
      %487 = vst.msk [vmem:[%s249] sm:$0xff] %vm486, %v464
      %488 = vst.msk [vmem:[%s249 + $0x8] sm:$0xff] %vm486, %v467
      %489 = vst.msk [vmem:[%s249 + $0x10] sm:$0xff] %vm486, %v470
      %490 = vst.msk [vmem:[%s249 + $0x18] sm:$0xff] %vm486, %v473
      %491 = vst.msk [vmem:[%s249 + $0x20] sm:$0xff] %vm486, %v476
      %492 = vst.msk [vmem:[%s249 + $0x28] sm:$0xff] %vm486, %v479
      %493 = vst.msk [vmem:[%s249 + $0x30] sm:$0xff] %vm486, %v482
      %494 = vst.msk [vmem:[%s249 + $0x38] sm:$0xff] %vm486, %v485
      %v495 = vmul.f32 %v398, %v398
      %v496 = vmul.f32 %v427, %v427
      %v497 = vmul.f32 %v400, %v400
      %v498 = vmul.f32 %v429, %v429
      %v499 = vmul.f32 %v403, %v403
      %v500 = vmul.f32 %v432, %v432
      %v501 = vmul.f32 %v405, %v405
      %v502 = vmul.f32 %v434, %v434
      %v503 = vmul.f32 %v408, %v408
      %v504 = vmul.f32 %v437, %v437
      %v505 = vmul.f32 %v410, %v410
      %v506 = vmul.f32 %v439, %v439
      %v507 = vmul.f32 %v413, %v413
      %v508 = vmul.f32 %v442, %v442
      %v509 = vmul.f32 %v415, %v415
      %v510 = vmul.f32 %v444, %v444
      %v511 = vadd.f32 %v495, %v496
      %512 = vadd.xlane.f32.xlu0 %v511
      %v513 = vpop.xlane.xlu0 %512
      %v514 = vadd.f32 %v497, %v498
      %515 = vadd.xlane.f32.xlu0 %v514
      %v516 = vpop.xlane.xlu0 %515
      %v517 = vadd.f32 %v499, %v500
      %518 = vadd.xlane.f32.xlu0 %v517
      %v519 = vpop.xlane.xlu0 %518
      %v520 = vadd.f32 %v501, %v502
      %521 = vadd.xlane.f32.xlu0 %v520
      %v522 = vpop.xlane.xlu0 %521
      %v523 = vadd.f32 %v503, %v504
      %524 = vadd.xlane.f32.xlu0 %v523
      %v525 = vpop.xlane.xlu0 %524
      %v526 = vadd.f32 %v505, %v506
      %527 = vadd.xlane.f32.xlu0 %v526
      %v528 = vpop.xlane.xlu0 %527
      %v529 = vadd.f32 %v507, %v508
      %530 = vadd.xlane.f32.xlu0 %v529
      %v531 = vpop.xlane.xlu0 %530
      %v532 = vadd.f32 %v509, %v510
      %533 = vadd.xlane.f32.xlu0 %v532
      %v534 = vpop.xlane.xlu0 %533
      %vm535 = vcmask 15368
      %536 = vst.msk [vmem:[%s249] sm:$0xff] %vm535, %v513
      %537 = vst.msk [vmem:[%s249 + $0x8] sm:$0xff] %vm535, %v516
      %538 = vst.msk [vmem:[%s249 + $0x10] sm:$0xff] %vm535, %v519
      %539 = vst.msk [vmem:[%s249 + $0x18] sm:$0xff] %vm535, %v522
      %540 = vst.msk [vmem:[%s249 + $0x20] sm:$0xff] %vm535, %v525
      %541 = vst.msk [vmem:[%s249 + $0x28] sm:$0xff] %vm535, %v528
      %542 = vst.msk [vmem:[%s249 + $0x30] sm:$0xff] %vm535, %v531
      %543 = vst.msk [vmem:[%s249 + $0x38] sm:$0xff] %vm535, %v534
      %p544 = scmp.lt.s32.totalorder %s20, 1
      %s545 = scalar_select %p544, %s20, 1
      %p546 = scmp.lt.s32.totalorder %s21, 0
      %s547 = scalar_select %p546, %s21, 0
      %s548 = smul.addr %s547, 8
      %s549 = smul.addr %s545, 8
      %s550 = sadd.s32 %s548, %s549
      %s551 = smul.addr %s550, 8
      %s552 = scalar_lea.vmem %s3, %s551
      %s553 = smul.u32 2, %s21
      %p554 = scmp.lt.s32.totalorder %s20, 1
      %s555 = scalar_select %p554, %s20, 1
      %p556 = scmp.lt.s32.totalorder %s553, 1
      %s557 = scalar_select %p556, %s553, 1
      %s558 = smul.addr %s555, 16
      %s559 = sadd.s32 %s557, %s558
      %s560 = smul.addr %s559, 4
      %s561 = scalar_lea.vmem %s4, %s560
      // Predicated region
      $region33: #{projection_head.2} parent=31 // pred_check
        %p562 = pneg %p118
      $region34: #{projection_head.2} parent=31 // pred_check_branch
        %564 = sbr.rel (%p562) target = $region36
      $region35: #{projection_head.2} parent=31 // pred_region
        _
      $region36: #{projection_head.2} parent=31 // pred_fallthru
        _
      // Predicated region
      $region37: #{projection_head.2} parent=31 // pred_check
        %p565 = pneg %p146
      $region38: #{projection_head.2} parent=31 // pred_check_branch
        %567 = sbr.rel (%p565) target = $region40
      $region39: #{projection_head.2} parent=31 // pred_region
        %s568 = smul.u32 2, %s21
      $region40: #{projection_head.2} parent=31 // pred_fallthru
        _
    $region32: #{projection_head.2} parent=5 // pred_fallthru
      _
    %p569 = scmp.le.s32.totalorder 2, %s11
    // Predicated region
    $region41: #{projection_head.2} parent=5 // pred_check
      %p570 = pneg %p569
    $region42: #{projection_head.2} parent=5 // pred_check_branch
      %572 = sbr.rel (%p570) target = $region44
    $region43: #{projection_head.2} parent=5 // pred_region
      %s573 = ssub.s32 %s11, 2
      // Predicated region
      $region45: #{projection_head.2} parent=43 // pred_check
        %p574 = pneg %p124
      $region46: #{projection_head.2} parent=43 // pred_check_branch
        %576 = sbr.rel (%p574) target = $region48
      $region47: #{projection_head.2} parent=43 // pred_region
        %p577 = scmp.lt.s32.totalorder %s22, 1
        %s578 = scalar_select %p577, %s22, 1
        %p579 = scmp.lt.s32.totalorder %s23, 0
        %s580 = scalar_select %p579, %s23, 0
        %s581 = smul.addr %s580, 8
        %s582 = smul.addr %s578, 8
        %s583 = sadd.s32 %s581, %s582
        %s584 = smul.addr %s583, 8
        %s585 = scalar_lea.vmem %s3, %s584
      $region48: #{projection_head.2} parent=43 // pred_fallthru
        _
      // Predicated region
      $region49: #{projection_head.2} parent=43 // pred_check
        %p586 = pneg %p152
      $region50: #{projection_head.2} parent=43 // pred_check_branch
        %588 = sbr.rel (%p586) target = $region52
      $region51: #{projection_head.2} parent=43 // pred_region
        %s589 = smul.u32 2, %s23
        %p590 = scmp.lt.s32.totalorder %s22, 1
        %s591 = scalar_select %p590, %s22, 1
        %p592 = scmp.lt.s32.totalorder %s589, 1
        %s593 = scalar_select %p592, %s589, 1
        %s594 = smul.addr %s591, 16
        %s595 = sadd.s32 %s593, %s594
        %s596 = smul.addr %s595, 4
        %s597 = scalar_lea.vmem %s4, %s596
      $region52: #{projection_head.2} parent=43 // pred_fallthru
        _
    $region44: #{projection_head.2} parent=5 // pred_fallthru
      _
  $region6: #{projection_head.2} parent=0 // loop_footer
    %s15 = sadd.s32 1, %s11
  $region7: #{projection_head.2} parent=0 // loop_footer_branch
    %10 = sbr.rel target = $region3
  $region8: #{projection_head.2} parent=0 // loop_exit
    _

</llo_original>
